<compile_context>
chip_gen: v7x
topology: tpu7x:2x2x1
jax: 0.10.0
libtpu: 0.0.40
codegen_flags: <defaults>
</compile_context>

<pallas_src>
import jax
import jax.numpy as jnp
from jax.experimental import pallas as pl
from jax.experimental.pallas import tpu as pltpu


def _cdiv(a: int, b: int) -> int:
    return -(-a // b)


def _round_down_128(n: int) -> int:
    return (n // 128) * 128


_LANE_BYTES_TARGET = 4096      # >= 4 KiB contiguous per input-DMA row chunk
_BUF_BUDGET_BYTES = 24 << 20   # 2x(in) + 2x(out) pipeline buffers, v7x-safe


def _transpose_tile_kernel(x_ref, o_ref):
    """Transpose one (tc, tt) VMEM tile into its (tt, tc) output tile.

    Work is done per 128-sublane strip of the input (-> 128-lane column strip
    of the output) inside an scf.for loop, so the compiler never has to keep
    the whole (possibly multi-MiB) block live in vector registers.
    """
    tc, tt = x_ref.shape
    n_strips = tc // 128  # tc is always a multiple of 128 on this path

    if n_strips <= 1:
        o_ref[...] = jnp.transpose(x_ref[...], (1, 0))
        return

    @pl.loop(0, n_strips)
    def _(i):
        s = pl.multiple_of(i * 128, 128)
        strip = x_ref[pl.ds(s, 128), :]                      # (128, tt)
        o_ref[:, pl.ds(s, 128)] = jnp.transpose(strip, (1, 0))


def permute_021(x: jax.Array) -> jax.Array:
    """Pallas equivalent of torch.permute(x, (0, 2, 1)).contiguous().

    x: (B, C, T) -> (B, T, C)
    """
    B, C, T = x.shape
    itemsize = jnp.dtype(x.dtype).itemsize

    # Fallbacks where a pallas_call is pure launch overhead or would force
    # heavily masked partial stores (output lane dim = C tile).
    if C < 128 or T < 128:
        return jnp.transpose(x, (0, 2, 1))
    if C < 256 and C % 128 != 0:
        return jnp.transpose(x, (0, 2, 1))

    # --- T (input-lane) tile: dtype-scaled so DMA row chunks stay >= 4 KiB.
    tt_pref = max(128, _LANE_BYTES_TARGET // itemsize)  # 1024 f32 / 2048 bf16 / 4096 i8
    tt = tt_pref if T >= tt_pref else T                 # full axis is always legal

    # --- C (output-lane) tile: take the FULL channel dim when the pipeline's
    #     4 buffers fit the budget -> contiguous, unmasked output rows and the
    #     C grid axis collapses to 1.  Otherwise use a 128-aligned tile.
    tile_budget = _BUF_BUDGET_BYTES // 4
    if C % 128 == 0 and C * tt * itemsize <= tile_budget:
        tc = C
    elif C % 128 == 0:
        tc = min(512, C)
    else:
        tc = _round_down_128(min(512, C))  # >= 256 here; masked edge block on C

    # v7x has 2 TensorCores per chip: keep at least 2 parallel grid steps.
    if B * _cdiv(C, tc) * _cdiv(T, tt) < 2 and T >= 256:
        tt = 128 * _cdiv(_cdiv(T, 2), 128)

    grid = (B, _cdiv(C, tc), _cdiv(T, tt))

    footprint = 4 * tc * tt * itemsize  # double-buffered in + out tiles
    vmem_limit = int(min(56 << 20, max(32 << 20, 2 * footprint)))

    cost = pl.CostEstimate(
        flops=0,
        transcendentals=0,
        bytes_accessed=2 * B * C * T * itemsize,  # pure HBM read + write
    )

    return pl.pallas_call(
        _transpose_tile_kernel,
        out_shape=jax.ShapeDtypeStruct((B, T, C), x.dtype),
        grid_spec=pltpu.PrefetchScalarGridSpec(
            num_scalar_prefetch=0,
            grid=grid,
            in_specs=[
                pl.BlockSpec((None, tc, tt), lambda b, ci, ti: (b, ci, ti)),
            ],
            out_specs=pl.BlockSpec((None, tt, tc), lambda b, ci, ti: (b, ti, ci)),
        ),
        compiler_params=pltpu.CompilerParams(
            # All axes independent: megacore (v7x: 2 TCs) can shard batch and
            # the C/T tile grid (harmless on single-TC v5e/v6e).
            dimension_semantics=("parallel", "parallel", "parallel"),
            vmem_limit_bytes=vmem_limit,
        ),
        cost_estimate=cost,
    )(x)


class Permute:
    """JAX/Pallas port of the PyTorch Permute module."""

    def __init__(self, dims):
        self.dims = tuple(dims)

    def __call__(self, x: jax.Array) -> jax.Array:
        if self.dims == (0, 2, 1) and x.ndim == 3:
            return permute_021(x)
        # General permutations: JAX arrays are always "contiguous" to the
        # consumer, so jnp.transpose matches permute(...).contiguous().
        return jnp.transpose(x, self.dims)


if __name__ == "__main__":
    key = jax.random.PRNGKey(0)
    k1, k2, k3, k4, k5 = jax.random.split(key, 5)
    mod = Permute((0, 2, 1))

    # 1) Full-C tile (tc = C = 256): contiguous output rows, strip loop (2 strips).
    x1 = jax.random.normal(k1, (2, 256, 512), dtype=jnp.float32)
    o1 = jax.block_until_ready(mod(x1))
    assert o1.shape == (2, 512, 256), o1.shape
    assert o1.dtype == x1.dtype
    assert jnp.array_equal(o1, jnp.transpose(x1, (0, 2, 1)))

    # 2) B == 1: T axis is split for 2-TC occupancy; masked edge block along T.
    x2 = jax.random.normal(k2, (1, 640, 384), dtype=jnp.float32)
    o2 = jax.block_until_ready(mod(x2))
    assert o2.shape == (1, 384, 640), o2.shape
    assert jnp.array_equal(o2, jnp.transpose(x2, (0, 2, 1)))

    # 3) C not a multiple of 128 (>= 256): 128-aligned C tile, masked edge on C.
    x3 = jax.random.normal(k3, (1, 320, 256), dtype=jnp.float32)
    o3 = jax.block_until_ready(mod(x3))
    assert o3.shape == (1, 256, 320), o3.shape
    assert jnp.array_equal(o3, jnp.transpose(x3, (0, 2, 1)))

    # 4) bf16 path (dtype-scaled T tile, sublane-packed transpose).
    x4 = jax.random.normal(k4, (2, 256, 512), dtype=jnp.bfloat16)
    o4 = jax.block_until_ready(mod(x4))
    assert o4.shape == (2, 512, 256), o4.shape
    assert o4.dtype == jnp.bfloat16
    assert jnp.array_equal(o4, jnp.transpose(x4, (0, 2, 1)))

    # 5) Tiny-shape fast path and a general-permutation fallback.
    x5 = jax.random.normal(k5, (2, 16, 32), dtype=jnp.float32)
    o5 = jax.block_until_ready(mod(x5))
    assert jnp.array_equal(o5, jnp.transpose(x5, (0, 2, 1)))
    mod_g = Permute((2, 0, 1))
    og = jax.block_until_ready(mod_g(x5))
    assert jnp.array_equal(og, jnp.transpose(x5, (2, 0, 1)))

    print("KERNEL_OK")
</pallas_src>

<mosaic_0001>
module attributes {stable_mosaic.version = 11 : i64} {
  func.func @_transpose_tile_kernel(%arg0: i32, %arg1: i32, %arg2: i32, %arg3: memref<1x256x512xf32, #tpu.memory_space<vmem>>, %arg4: memref<1x512x256xf32, #tpu.memory_space<vmem>>) attributes {dimension_semantics = [#tpu.dimension_semantics<parallel>, #tpu.dimension_semantics<parallel>, #tpu.dimension_semantics<parallel>], iteration_bounds = array<i64: 2, 1, 1>, scalar_prefetch = 0 : i64, scratch_operands = 0 : i64, tpu.core_type = #tpu.core_type<tc>, window_params = [{transform_indices = @transform_0, window_bounds = array<i64: 1, 256, 512>}, {transform_indices = @transform_1, window_bounds = array<i64: 1, 512, 256>}]} {
    %c0_i32 = arith.constant 0 : i32
    %c2_i32 = arith.constant 2 : i32
    %0 = arith.addi %c0_i32, %c2_i32 : i32
    %c1_i32 = arith.constant 1 : i32
    scf.for %arg5 = %c0_i32 to %0 step %c1_i32  : i32 {
      %c1_i32_1 = arith.constant 1 : i32
      %1 = arith.muli %arg5, %c1_i32_1 : i32
      %c0_i32_2 = arith.constant 0 : i32
      %2 = arith.addi %c0_i32_2, %1 : i32
      %c128_i32 = arith.constant 128 : i32
      %3 = arith.muli %2, %c128_i32 : i32
      %4 = tpu.assume_multiple %3, 128 : i32
      %c0 = arith.constant 0 : index
      %5 = arith.index_cast %4 : i32 to index
      %c0_3 = arith.constant 0 : index
      %6 = vector.load %arg3[%c0, %5, %c0_3] : memref<1x256x512xf32, #tpu.memory_space<vmem>>, vector<1x128x512xf32>
      %7 = vector.shape_cast %6 : vector<1x128x512xf32> to vector<128x512xf32>
      %8 = tpu.transpose %7, [1, 0] : vector<128x512xf32> -> vector<512x128xf32>
      %c0_4 = arith.constant 0 : index
      %c0_5 = arith.constant 0 : index
      %9 = arith.index_cast %4 : i32 to index
      %10 = vector.load %arg4[%c0_4, %c0_5, %9] : memref<1x512x256xf32, #tpu.memory_space<vmem>>, vector<1x512x128xf32>
      %11 = vector.shape_cast %10 : vector<1x512x128xf32> to vector<512x128xf32>
      %12 = vector.shape_cast %8 : vector<512x128xf32> to vector<1x512x128xf32>
      tpu.vector_store %arg4[%c0_4, %c0_5, %9], %12 {strides = array<i32>} : memref<1x512x256xf32, #tpu.memory_space<vmem>>, vector<1x512x128xf32>,
    }
    %c2_i32_0 = arith.constant 2 : i32
    return
  }
  func.func @transform_0(%arg0: i32, %arg1: i32, %arg2: i32) -> (i32, i32, i32) {
    %c0_i32 = arith.constant 0 : i32
    return %arg0, %arg1, %arg2 : i32, i32, i32
  }
  func.func @transform_1(%arg0: i32, %arg1: i32, %arg2: i32) -> (i32, i32, i32) {
    %c0_i32 = arith.constant 0 : i32
    return %arg0, %arg2, %arg1 : i32, i32, i32
  }
}

</mosaic_0001>

<llo_original>
// kernel: tpu_custom_call.1
$region0: #{tpu_custom_call.1}
  #allocation0 [shape = 'u32[]', space=smem, size = 0x4, offset = 0x4, fixed_abs, tag = 'smem constant byte address 0x4 - core index']
  #allocation1 [shape = 'u32[144,128]{1,0:T(1,128)}', space=vmem, size = 0x12000, scoped, tag = 'internal scratch']
  %s0 = inlined_call_operand.hbm [shape: f32[2,256,512], index: 0, kind: input, shape index: {}]
  %s1 = inlined_call_operand.hbm [shape: f32[2,512,256], index: 1, kind: output, shape index: {}]
  %s2 = sld [smem:[#allocation0]]
  $region48: #{tpu_custom_call.1} parent=0
    _
  %s4 = ssub.s32 1, %s2
  %s5 = scalar_select 0, %s4, %s2
  $region1: #{tpu_custom_call.1} parent=0
    #allocation2 [shape = 'u8[1048576]{0}', space=vmem, size = 0x100000, scoped, tag = 'input window, operand 0']
    #allocation3 [shape = 's32[2]{0}', space=sflag, size = 0x8, scoped, tag = 'scoped memory for tpu_custom_call.1']
    #allocation4 [shape = 's32[2]{0}', space=sflag, size = 0x8, scoped, tag = 'scoped memory for tpu_custom_call.1']
    #allocation5 [shape = 'u8[1048576]{0}', space=vmem, size = 0x100000, scoped, tag = 'output window, operand 0']
    %6 = vsyncpa [#allocation3], 0
    %s7 = scalar_lea.sflag [#allocation3], 1
    %8 = vsyncpa %s7, 0
    %9 = vsyncpa [#allocation4], 0
    %s10 = scalar_lea.sflag [#allocation4], 1
    %11 = vsyncpa %s10, 0
    loop: start=0, step=1, limit=4
    $region2: #{tpu_custom_call.1} parent=1 // loop_pre_header
      _
    $region3: #{tpu_custom_call.1} parent=1 // loop_header
      %s13 = sphi 0, %s17
      %p14 = scmp.ge.s32.totalorder %s13, 4
      %s20 = sphi 0, %s39
      %s21 = sphi 0, %s35
      %s22 = sphi 0, %s31
      %s23 = sphi 0, %s20
      %s24 = sphi 0, %s21
      %s25 = sphi 0, %s22
      %s26 = sphi 0, %s23
      %s27 = sphi 0, %s24
      %s28 = sphi 0, %s25
      %s46 = sphi 0, %s48
      %s49 = sphi 0, %s46
      %s50 = sphi 0, %s49
      %s66 = sphi 0, %s50
      %s76 = sphi 0, %s78
      %s79 = sphi 0, %s76
      %s80 = sphi 0, %s79
      %s96 = sphi 0, %s80
    $region4: #{tpu_custom_call.1} parent=1 // loop_header_branch
      %16 = sbr.rel (%p14) target = $region8
    $region5: #{tpu_custom_call.1} parent=1 // loop_body
      %s18 = ssub.s32 %s13, 1
      %s19 = ssub.s32 %s13, 2
      %s29 = sadd.s32 1, %s22
      %p30 = scmp.ge.s32.totalorder %s29, 1
      %s31 = scalar_select %p30, 0, %s29
      %s32 = sadd.s32 1, %s21
      %s33 = scalar_select %p30, %s32, %s21
      %p34 = scmp.ge.s32.totalorder %s33, 1
      %s35 = scalar_select %p34, 0, %s33
      %s36 = sadd.s32 1, %s20
      %s37 = scalar_select %p34, %s36, %s20
      %p38 = scmp.ge.s32.totalorder %s37, 2
      %s39 = scalar_select %p38, 0, %s37
      %s40 = ssub.s32 %s20, %s39
      %s41 = ssub.s32 %s21, %s35
      %s42 = sor.u32 %s40, %s41
      %s43 = ssub.s32 %s22, %s31
      %s44 = sor.u32 %s42, %s43
      %p45 = scmp.eq.s32.totalorder %s44, 0
      %s47 = sadd.s32 %s46, 1
      %s48 = scalar_select %p45, %s46, %s47
      %p51 = pneg %p45
      %p52 = scmp.eq.s32.totalorder %s13, 1
      %p53 = por %p51, %p52
      %p54 = scmp.ne.s32.totalorder %s46, %s49
      %p55 = scmp.eq.s32.totalorder %s13, 0
      %p56 = por %p54, %p55
      %p57 = scmp.ne.s32.totalorder %s46, %s49
      %p58 = scmp.eq.s32.totalorder %s18, 1
      %p59 = por %p57, %p58
      %p60 = scmp.ne.s32.totalorder %s49, %s50
      %p61 = scmp.eq.s32.totalorder %s18, 0
      %p62 = por %p60, %p61
      %p63 = scmp.ne.s32.totalorder %s49, %s50
      %p64 = scmp.eq.s32.totalorder %s19, 1
      %p65 = por %p63, %p64
      %p67 = scmp.ne.s32.totalorder %s50, %s66
      %p68 = scmp.eq.s32.totalorder %s19, 0
      %p69 = por %p67, %p68
      %s70 = ssub.s32 %s20, %s39
      %s71 = ssub.s32 %s22, %s31
      %s72 = sor.u32 %s70, %s71
      %s73 = ssub.s32 %s21, %s35
      %s74 = sor.u32 %s72, %s73
      %p75 = scmp.eq.s32.totalorder %s74, 0
      %s77 = sadd.s32 %s76, 1
      %s78 = scalar_select %p75, %s76, %s77
      %p81 = pneg %p75
      %p82 = scmp.eq.s32.totalorder %s13, 1
      %p83 = por %p81, %p82
      %p84 = scmp.ne.s32.totalorder %s76, %s79
      %p85 = scmp.eq.s32.totalorder %s13, 0
      %p86 = por %p84, %p85
      %p87 = scmp.ne.s32.totalorder %s76, %s79
      %p88 = scmp.eq.s32.totalorder %s18, 1
      %p89 = por %p87, %p88
      %p90 = scmp.ne.s32.totalorder %s79, %s80
      %p91 = scmp.eq.s32.totalorder %s18, 0
      %p92 = por %p90, %p91
      %p93 = scmp.ne.s32.totalorder %s79, %s80
      %p94 = scmp.eq.s32.totalorder %s19, 1
      %p95 = por %p93, %p94
      %p97 = scmp.ne.s32.totalorder %s80, %s96
      %p98 = scmp.eq.s32.totalorder %s19, 0
      %p99 = por %p97, %p98
      %p100 = scmp.le.s32.totalorder 1, %s13
      %p101 = scmp.lt.s32.totalorder %s13, 3
      %p102 = pnand %p100, %p101
      %p103 = pneg %p102
      // Predicated region
      $region9: #{tpu_custom_call.1} parent=5 // pred_check
        _
      $region10: #{tpu_custom_call.1} parent=5 // pred_check_branch
        %105 = sbr.rel (%p102) target = $region12
      $region11: #{tpu_custom_call.1} parent=5 // pred_region
        %s106 = ssub.s32 %s13, 1
      $region12: #{tpu_custom_call.1} parent=5 // pred_fallthru
        _
      %p107 = scmp.lt.s32.totalorder %s13, 2
      // Predicated region
      $region13: #{tpu_custom_call.1} parent=5 // pred_check
        %p108 = pneg %p107
      $region14: #{tpu_custom_call.1} parent=5 // pred_check_branch
        %110 = sbr.rel (%p108) target = $region16
      $region15: #{tpu_custom_call.1} parent=5 // pred_region
        // Predicated region
        $region17: #{tpu_custom_call.1} parent=15 // pred_check
          %p111 = pneg %p56
        $region18: #{tpu_custom_call.1} parent=15 // pred_check_branch
          %113 = sbr.rel (%p111) target = $region20
        $region19: #{tpu_custom_call.1} parent=15 // pred_region
          %s114 = sand.u32 %s46, 1
          %s115 = scalar_lea.sflag [#allocation3], %s114
          %s116 = sand.u32 %s46, 1
          %s117 = smul.addr %s116, 1024
          %s118 = scalar_lea.vmem [#allocation2], %s117
          %s119 = smul.u32 32, %s21
          %s120 = smul.u32 4, %s22
          %s122 = ssub.s32 16384, 16384
          %123 = vsyncadd %s115, %s122
          %s124 = smul.addr %s119, 4
          %s125 = sadd.s32 %s120, %s124
          %s126 = smul.addr %s20, 128
          %s127 = sadd.s32 %s125, %s126
          %s128 = smul.addr %s127, 128
          %s129 = scalar_lea.hbm %s0, %s128
          %s130 = sshll.u32 %s118, 4
          %s131 = int_to_ptr.vmem [resolvable:$true] %s130
          %136 = dma.hbm_to_vmem [thread:$0]  %s129, 16384, %s131, %s115, 512, 512, 32
        $region20: #{tpu_custom_call.1} parent=15 // pred_fallthru
          _
      $region16: #{tpu_custom_call.1} parent=5 // pred_fallthru
        _
      %p137 = scmp.le.s32.totalorder 1, %s13
      %p138 = scmp.lt.s32.totalorder %s13, 3
      %p139 = pnand %p137, %p138
      %p140 = pneg %p139
      // Predicated region
      $region21: #{tpu_custom_call.1} parent=5 // pred_check
        _
      $region22: #{tpu_custom_call.1} parent=5 // pred_check_branch
        %142 = sbr.rel (%p139) target = $region24
      $region23: #{tpu_custom_call.1} parent=5 // pred_region
        %s143 = ssub.s32 %s13, 1
        %s144 = sand.u32 %s49, 1
        %s145 = scalar_lea.sflag [#allocation3], %s144
        %s146 = sand.u32 %s49, 1
        %s147 = smul.addr %s146, 1024
        %s148 = scalar_lea.vmem [#allocation2], %s147
        // Predicated region
        $region25: #{tpu_custom_call.1} parent=23 // pred_check
          %p149 = pneg %p62
        $region26: #{tpu_custom_call.1} parent=23 // pred_check_branch
          %151 = sbr.rel (%p149) target = $region28
        $region27: #{tpu_custom_call.1} parent=23 // pred_region
          %152 = dma.done %s145, 16384
        $region28: #{tpu_custom_call.1} parent=23 // pred_fallthru
          _
        %s153 = sand.u32 %s49, 1
        %s154 = scalar_lea.sflag [#allocation3], %s153
        %s155 = sand.u32 %s49, 1
        %s156 = smul.addr %s155, 1024
        %s157 = scalar_lea.vmem [#allocation2], %s156
        %p158 = pneg %p62
        %p159 = pneg %p59
        %p160 = pneg %p92
        %p161 = pneg %p89
        %s162 = sand.u32 %s79, 1
        %s163 = scalar_lea.sflag [#allocation4], %s162
        %s164 = sand.u32 %s79, 1
        %s165 = smul.addr %s164, 1024
        %s166 = scalar_lea.vmem [#allocation5], %s165
        %s167 = smul.u32 32, %s24
        %s168 = smul.u32 4, %s25
        %s169 = smul.u32 64, %s25
        %s170 = smul.u32 2, %s24
        loop: start=0, step=1, limit=2
        $region29: #{tpu_custom_call.1} parent=23 // loop_pre_header
          _
        $region30: #{tpu_custom_call.1} parent=23 // loop_header
          %s172 = sphi 0, %s176
          %p173 = scmp.ge.s32.totalorder %s172, 2
        $region31: #{tpu_custom_call.1} parent=23 // loop_header_branch
          %175 = sbr.rel (%p173) target = $region35
        $region32: #{tpu_custom_call.1} parent=23 // loop_body
          %s177 = smul.u32 %s172, 128
          %s178 = sshra.s32 %s177, 3
          %s179 = sand.u32 %s177, 7
          %s180 = smul.u32 %s178, 4
          %s181 = smul.addr %s180, 8
          %s182 = scalar_lea.vmem %s148, %s181 [#allocation2]
          %v183 = vld [vmem:[%s182] sm:$0xff]
          %v184 = vld [vmem:[%s182 + $0x8] sm:$0xff]
          %v185 = vld [vmem:[%s182 + $0x10] sm:$0xff]
          %v186 = vld [vmem:[%s182 + $0x18] sm:$0xff]
          %v187 = vld [vmem:[%s182 + $0x20] sm:$0xff]
          %v188 = vld [vmem:[%s182 + $0x28] sm:$0xff]
          %v189 = vld [vmem:[%s182 + $0x30] sm:$0xff]
          %v190 = vld [vmem:[%s182 + $0x38] sm:$0xff]
          %v191 = vld [vmem:[%s182 + $0x40] sm:$0xff]
          %v192 = vld [vmem:[%s182 + $0x48] sm:$0xff]
          %v193 = vld [vmem:[%s182 + $0x50] sm:$0xff]
          %v194 = vld [vmem:[%s182 + $0x58] sm:$0xff]
          %v195 = vld [vmem:[%s182 + $0x60] sm:$0xff]
          %v196 = vld [vmem:[%s182 + $0x68] sm:$0xff]
          %v197 = vld [vmem:[%s182 + $0x70] sm:$0xff]
          %v198 = vld [vmem:[%s182 + $0x78] sm:$0xff]
          %v199 = vld [vmem:[%s182 + $0x80] sm:$0xff]
          %v200 = vld [vmem:[%s182 + $0x88] sm:$0xff]
          %v201 = vld [vmem:[%s182 + $0x90] sm:$0xff]
          %v202 = vld [vmem:[%s182 + $0x98] sm:$0xff]
          %v203 = vld [vmem:[%s182 + $0xa0] sm:$0xff]
          %v204 = vld [vmem:[%s182 + $0xa8] sm:$0xff]
          %v205 = vld [vmem:[%s182 + $0xb0] sm:$0xff]
          %v206 = vld [vmem:[%s182 + $0xb8] sm:$0xff]
          %v207 = vld [vmem:[%s182 + $0xc0] sm:$0xff]
          %v208 = vld [vmem:[%s182 + $0xc8] sm:$0xff]
          %v209 = vld [vmem:[%s182 + $0xd0] sm:$0xff]
          %v210 = vld [vmem:[%s182 + $0xd8] sm:$0xff]
          %v211 = vld [vmem:[%s182 + $0xe0] sm:$0xff]
          %v212 = vld [vmem:[%s182 + $0xe8] sm:$0xff]
          %v213 = vld [vmem:[%s182 + $0xf0] sm:$0xff]
          %v214 = vld [vmem:[%s182 + $0xf8] sm:$0xff]
          %v215 = vld [vmem:[%s182 + $0x100] sm:$0xff]
          %v216 = vld [vmem:[%s182 + $0x108] sm:$0xff]
          %v217 = vld [vmem:[%s182 + $0x110] sm:$0xff]
          %v218 = vld [vmem:[%s182 + $0x118] sm:$0xff]
          %v219 = vld [vmem:[%s182 + $0x120] sm:$0xff]
          %v220 = vld [vmem:[%s182 + $0x128] sm:$0xff]
          %v221 = vld [vmem:[%s182 + $0x130] sm:$0xff]
          %v222 = vld [vmem:[%s182 + $0x138] sm:$0xff]
          %v223 = vld [vmem:[%s182 + $0x140] sm:$0xff]
          %v224 = vld [vmem:[%s182 + $0x148] sm:$0xff]
          %v225 = vld [vmem:[%s182 + $0x150] sm:$0xff]
          %v226 = vld [vmem:[%s182 + $0x158] sm:$0xff]
          %v227 = vld [vmem:[%s182 + $0x160] sm:$0xff]
          %v228 = vld [vmem:[%s182 + $0x168] sm:$0xff]
          %v229 = vld [vmem:[%s182 + $0x170] sm:$0xff]
          %v230 = vld [vmem:[%s182 + $0x178] sm:$0xff]
          %v231 = vld [vmem:[%s182 + $0x180] sm:$0xff]
          %v232 = vld [vmem:[%s182 + $0x188] sm:$0xff]
          %v233 = vld [vmem:[%s182 + $0x190] sm:$0xff]
          %v234 = vld [vmem:[%s182 + $0x198] sm:$0xff]
          %v235 = vld [vmem:[%s182 + $0x1a0] sm:$0xff]
          %v236 = vld [vmem:[%s182 + $0x1a8] sm:$0xff]
          %v237 = vld [vmem:[%s182 + $0x1b0] sm:$0xff]
          %v238 = vld [vmem:[%s182 + $0x1b8] sm:$0xff]
          %v239 = vld [vmem:[%s182 + $0x1c0] sm:$0xff]
          %v240 = vld [vmem:[%s182 + $0x1c8] sm:$0xff]
          %v241 = vld [vmem:[%s182 + $0x1d0] sm:$0xff]
          %v242 = vld [vmem:[%s182 + $0x1d8] sm:$0xff]
          %v243 = vld [vmem:[%s182 + $0x1e0] sm:$0xff]
          %v244 = vld [vmem:[%s182 + $0x1e8] sm:$0xff]
          %v245 = vld [vmem:[%s182 + $0x1f0] sm:$0xff]
          %v246 = vld [vmem:[%s182 + $0x1f8] sm:$0xff]
          %247 = vxpose.xlu0.b32.start [1/16] %v183, 128
          %248 = vxpose.xlu0.b32.cont [2/16] %v187, 128
          %249 = vxpose.xlu0.b32.cont [3/16] %v191, 128
          %250 = vxpose.xlu0.b32.cont [4/16] %v195, 128
          %251 = vxpose.xlu0.b32.cont [5/16] %v199, 128
          %252 = vxpose.xlu0.b32.cont [6/16] %v203, 128
          %253 = vxpose.xlu0.b32.cont [7/16] %v207, 128
          %254 = vxpose.xlu0.b32.cont [8/16] %v211, 128
          %255 = vxpose.xlu0.b32.cont [9/16] %v215, 128
          %256 = vxpose.xlu0.b32.cont [10/16] %v219, 128
          %257 = vxpose.xlu0.b32.cont [11/16] %v223, 128
          %258 = vxpose.xlu0.b32.cont [12/16] %v227, 128
          %259 = vxpose.xlu0.b32.cont [13/16] %v231, 128
          %260 = vxpose.xlu0.b32.cont [14/16] %v235, 128
          %261 = vxpose.xlu0.b32.cont [15/16] %v239, 128
          %262 = vxpose.xlu0.b32.end [16/16] %v243, 128
          %v263 = vpop.trf.xlu0
          %v264 = vpop.trf.xlu0
          %v265 = vpop.trf.xlu0
          %v266 = vpop.trf.xlu0
          %v267 = vpop.trf.xlu0
          %v268 = vpop.trf.xlu0
          %v269 = vpop.trf.xlu0
          %v270 = vpop.trf.xlu0
          %v271 = vpop.trf.xlu0
          %v272 = vpop.trf.xlu0
          %v273 = vpop.trf.xlu0
          %v274 = vpop.trf.xlu0
          %v275 = vpop.trf.xlu0
          %v276 = vpop.trf.xlu0
          %v277 = vpop.trf.xlu0
          %v278 = vpop.trf.xlu0
          %279 = vxpose.xlu0.b32.start [1/16] %v184, 128
          %280 = vxpose.xlu0.b32.cont [2/16] %v188, 128
          %281 = vxpose.xlu0.b32.cont [3/16] %v192, 128
          %282 = vxpose.xlu0.b32.cont [4/16] %v196, 128
          %283 = vxpose.xlu0.b32.cont [5/16] %v200, 128
          %284 = vxpose.xlu0.b32.cont [6/16] %v204, 128
          %285 = vxpose.xlu0.b32.cont [7/16] %v208, 128
          %286 = vxpose.xlu0.b32.cont [8/16] %v212, 128
          %287 = vxpose.xlu0.b32.cont [9/16] %v216, 128
          %288 = vxpose.xlu0.b32.cont [10/16] %v220, 128
          %289 = vxpose.xlu0.b32.cont [11/16] %v224, 128
          %290 = vxpose.xlu0.b32.cont [12/16] %v228, 128
          %291 = vxpose.xlu0.b32.cont [13/16] %v232, 128
          %292 = vxpose.xlu0.b32.cont [14/16] %v236, 128
          %293 = vxpose.xlu0.b32.cont [15/16] %v240, 128
          %294 = vxpose.xlu0.b32.end [16/16] %v244, 128
          %v295 = vpop.trf.xlu0
          %v296 = vpop.trf.xlu0
          %v297 = vpop.trf.xlu0
          %v298 = vpop.trf.xlu0
          %v299 = vpop.trf.xlu0
          %v300 = vpop.trf.xlu0
          %v301 = vpop.trf.xlu0
          %v302 = vpop.trf.xlu0
          %v303 = vpop.trf.xlu0
          %v304 = vpop.trf.xlu0
          %v305 = vpop.trf.xlu0
          %v306 = vpop.trf.xlu0
          %v307 = vpop.trf.xlu0
          %v308 = vpop.trf.xlu0
          %v309 = vpop.trf.xlu0
          %v310 = vpop.trf.xlu0
          %311 = vxpose.xlu0.b32.start [1/16] %v185, 128
          %312 = vxpose.xlu0.b32.cont [2/16] %v189, 128
          %313 = vxpose.xlu0.b32.cont [3/16] %v193, 128
          %314 = vxpose.xlu0.b32.cont [4/16] %v197, 128
          %315 = vxpose.xlu0.b32.cont [5/16] %v201, 128
          %316 = vxpose.xlu0.b32.cont [6/16] %v205, 128
          %317 = vxpose.xlu0.b32.cont [7/16] %v209, 128
          %318 = vxpose.xlu0.b32.cont [8/16] %v213, 128
          %319 = vxpose.xlu0.b32.cont [9/16] %v217, 128
          %320 = vxpose.xlu0.b32.cont [10/16] %v221, 128
          %321 = vxpose.xlu0.b32.cont [11/16] %v225, 128
          %322 = vxpose.xlu0.b32.cont [12/16] %v229, 128
          %323 = vxpose.xlu0.b32.cont [13/16] %v233, 128
          %324 = vxpose.xlu0.b32.cont [14/16] %v237, 128
          %325 = vxpose.xlu0.b32.cont [15/16] %v241, 128
          %326 = vxpose.xlu0.b32.end [16/16] %v245, 128
          %v327 = vpop.trf.xlu0
          %v328 = vpop.trf.xlu0
          %v329 = vpop.trf.xlu0
          %v330 = vpop.trf.xlu0
          %v331 = vpop.trf.xlu0
          %v332 = vpop.trf.xlu0
          %v333 = vpop.trf.xlu0
          %v334 = vpop.trf.xlu0
          %v335 = vpop.trf.xlu0
          %v336 = vpop.trf.xlu0
          %v337 = vpop.trf.xlu0
          %v338 = vpop.trf.xlu0
          %v339 = vpop.trf.xlu0
          %v340 = vpop.trf.xlu0
          %v341 = vpop.trf.xlu0
          %v342 = vpop.trf.xlu0
          %343 = vxpose.xlu0.b32.start [1/16] %v186, 128
          %344 = vxpose.xlu0.b32.cont [2/16] %v190, 128
          %345 = vxpose.xlu0.b32.cont [3/16] %v194, 128
          %346 = vxpose.xlu0.b32.cont [4/16] %v198, 128
          %347 = vxpose.xlu0.b32.cont [5/16] %v202, 128
          %348 = vxpose.xlu0.b32.cont [6/16] %v206, 128
          %349 = vxpose.xlu0.b32.cont [7/16] %v210, 128
          %350 = vxpose.xlu0.b32.cont [8/16] %v214, 128
          %351 = vxpose.xlu0.b32.cont [9/16] %v218, 128
          %352 = vxpose.xlu0.b32.cont [10/16] %v222, 128
          %353 = vxpose.xlu0.b32.cont [11/16] %v226, 128
          %354 = vxpose.xlu0.b32.cont [12/16] %v230, 128
          %355 = vxpose.xlu0.b32.cont [13/16] %v234, 128
          %356 = vxpose.xlu0.b32.cont [14/16] %v238, 128
          %357 = vxpose.xlu0.b32.cont [15/16] %v242, 128
          %358 = vxpose.xlu0.b32.end [16/16] %v246, 128
          %v359 = vpop.trf.xlu0
          %v360 = vpop.trf.xlu0
          %v361 = vpop.trf.xlu0
          %v362 = vpop.trf.xlu0
          %v363 = vpop.trf.xlu0
          %v364 = vpop.trf.xlu0
          %v365 = vpop.trf.xlu0
          %v366 = vpop.trf.xlu0
          %v367 = vpop.trf.xlu0
          %v368 = vpop.trf.xlu0
          %v369 = vpop.trf.xlu0
          %v370 = vpop.trf.xlu0
          %v371 = vpop.trf.xlu0
          %v372 = vpop.trf.xlu0
          %v373 = vpop.trf.xlu0
          %v374 = vpop.trf.xlu0
          %s375 = sshra.s32 %s177, 7
          %s376 = sand.u32 %s177, 127
          %s377 = smul.addr %s375, 8
          %s378 = scalar_lea.vmem %s166, %s377 [#allocation5]
          %379 = vst [vmem:[%s378] sm:$0xff] %v263
          %380 = vst [vmem:[%s378 + $0x10] sm:$0xff] %v264
          %381 = vst [vmem:[%s378 + $0x20] sm:$0xff] %v265
          %382 = vst [vmem:[%s378 + $0x30] sm:$0xff] %v266
          %383 = vst [vmem:[%s378 + $0x40] sm:$0xff] %v267
          %384 = vst [vmem:[%s378 + $0x50] sm:$0xff] %v268
          %385 = vst [vmem:[%s378 + $0x60] sm:$0xff] %v269
          %386 = vst [vmem:[%s378 + $0x70] sm:$0xff] %v270
          %387 = vst [vmem:[%s378 + $0x80] sm:$0xff] %v271
          %388 = vst [vmem:[%s378 + $0x90] sm:$0xff] %v272
          %389 = vst [vmem:[%s378 + $0xa0] sm:$0xff] %v273
          %390 = vst [vmem:[%s378 + $0xb0] sm:$0xff] %v274
          %391 = vst [vmem:[%s378 + $0xc0] sm:$0xff] %v275
          %392 = vst [vmem:[%s378 + $0xd0] sm:$0xff] %v276
          %393 = vst [vmem:[%s378 + $0xe0] sm:$0xff] %v277
          %394 = vst [vmem:[%s378 + $0xf0] sm:$0xff] %v278
          %395 = vst [vmem:[%s378 + $0x100] sm:$0xff] %v295
          %396 = vst [vmem:[%s378 + $0x110] sm:$0xff] %v296
          %397 = vst [vmem:[%s378 + $0x120] sm:$0xff] %v297
          %398 = vst [vmem:[%s378 + $0x130] sm:$0xff] %v298
          %399 = vst [vmem:[%s378 + $0x140] sm:$0xff] %v299
          %400 = vst [vmem:[%s378 + $0x150] sm:$0xff] %v300
          %401 = vst [vmem:[%s378 + $0x160] sm:$0xff] %v301
          %402 = vst [vmem:[%s378 + $0x170] sm:$0xff] %v302
          %403 = vst [vmem:[%s378 + $0x180] sm:$0xff] %v303
          %404 = vst [vmem:[%s378 + $0x190] sm:$0xff] %v304
          %405 = vst [vmem:[%s378 + $0x1a0] sm:$0xff] %v305
          %406 = vst [vmem:[%s378 + $0x1b0] sm:$0xff] %v306
          %407 = vst [vmem:[%s378 + $0x1c0] sm:$0xff] %v307
          %408 = vst [vmem:[%s378 + $0x1d0] sm:$0xff] %v308
          %409 = vst [vmem:[%s378 + $0x1e0] sm:$0xff] %v309
          %410 = vst [vmem:[%s378 + $0x1f0] sm:$0xff] %v310
          %411 = vst [vmem:[%s378 + $0x200] sm:$0xff] %v327
          %412 = vst [vmem:[%s378 + $0x210] sm:$0xff] %v328
          %413 = vst [vmem:[%s378 + $0x220] sm:$0xff] %v329
          %414 = vst [vmem:[%s378 + $0x230] sm:$0xff] %v330
          %415 = vst [vmem:[%s378 + $0x240] sm:$0xff] %v331
          %416 = vst [vmem:[%s378 + $0x250] sm:$0xff] %v332
          %417 = vst [vmem:[%s378 + $0x260] sm:$0xff] %v333
          %418 = vst [vmem:[%s378 + $0x270] sm:$0xff] %v334
          %419 = vst [vmem:[%s378 + $0x280] sm:$0xff] %v335
          %420 = vst [vmem:[%s378 + $0x290] sm:$0xff] %v336
          %421 = vst [vmem:[%s378 + $0x2a0] sm:$0xff] %v337
          %422 = vst [vmem:[%s378 + $0x2b0] sm:$0xff] %v338
          %423 = vst [vmem:[%s378 + $0x2c0] sm:$0xff] %v339
          %424 = vst [vmem:[%s378 + $0x2d0] sm:$0xff] %v340
          %425 = vst [vmem:[%s378 + $0x2e0] sm:$0xff] %v341
          %426 = vst [vmem:[%s378 + $0x2f0] sm:$0xff] %v342
          %427 = vst [vmem:[%s378 + $0x300] sm:$0xff] %v359
          %428 = vst [vmem:[%s378 + $0x310] sm:$0xff] %v360
          %429 = vst [vmem:[%s378 + $0x320] sm:$0xff] %v361
          %430 = vst [vmem:[%s378 + $0x330] sm:$0xff] %v362
          %431 = vst [vmem:[%s378 + $0x340] sm:$0xff] %v363
          %432 = vst [vmem:[%s378 + $0x350] sm:$0xff] %v364
          %433 = vst [vmem:[%s378 + $0x360] sm:$0xff] %v365
          %434 = vst [vmem:[%s378 + $0x370] sm:$0xff] %v366
          %435 = vst [vmem:[%s378 + $0x380] sm:$0xff] %v367
          %436 = vst [vmem:[%s378 + $0x390] sm:$0xff] %v368
          %437 = vst [vmem:[%s378 + $0x3a0] sm:$0xff] %v369
          %438 = vst [vmem:[%s378 + $0x3b0] sm:$0xff] %v370
          %439 = vst [vmem:[%s378 + $0x3c0] sm:$0xff] %v371
          %440 = vst [vmem:[%s378 + $0x3d0] sm:$0xff] %v372
          %441 = vst [vmem:[%s378 + $0x3e0] sm:$0xff] %v373
          %442 = vst [vmem:[%s378 + $0x3f0] sm:$0xff] %v374
        $region33: #{tpu_custom_call.1} parent=23 // loop_footer
          %s176 = sadd.s32 1, %s172
        $region34: #{tpu_custom_call.1} parent=23 // loop_footer_branch
          %171 = sbr.rel target = $region30
        $region35: #{tpu_custom_call.1} parent=23 // loop_exit
          _
        %s443 = sand.u32 %s79, 1
        %s444 = scalar_lea.sflag [#allocation4], %s443
        %s445 = sand.u32 %s79, 1
        %s446 = smul.addr %s445, 1024
        %s447 = scalar_lea.vmem [#allocation5], %s446
        // Predicated region
        $region36: #{tpu_custom_call.1} parent=23 // pred_check
          %p448 = pneg %p89
        $region37: #{tpu_custom_call.1} parent=23 // pred_check_branch
          %450 = sbr.rel (%p448) target = $region39
        $region38: #{tpu_custom_call.1} parent=23 // pred_region
          %s451 = smul.u32 64, %s25
          %s452 = smul.u32 2, %s24
          %s454 = ssub.s32 16384, 16384
          %455 = vsyncadd %s444, %s454
          %s456 = smul.addr %s451, 2
          %s457 = sadd.s32 %s452, %s456
          %s458 = smul.addr %s23, 128
          %s459 = sadd.s32 %s457, %s458
          %s460 = smul.addr %s459, 128
          %s461 = scalar_lea.hbm %s1, %s460
          %s462 = sshll.u32 %s447, 4
          %s463 = int_to_ptr.vmem [resolvable:$true] %s462
          %468 = dma.vmem_to_hbm [thread:$0]  %s463, 16384, %s461, %s444, 256, 256, 16
        $region39: #{tpu_custom_call.1} parent=23 // pred_fallthru
          _
      $region24: #{tpu_custom_call.1} parent=5 // pred_fallthru
        _
      %p469 = scmp.le.s32.totalorder 2, %s13
      // Predicated region
      $region40: #{tpu_custom_call.1} parent=5 // pred_check
        %p470 = pneg %p469
      $region41: #{tpu_custom_call.1} parent=5 // pred_check_branch
        %472 = sbr.rel (%p470) target = $region43
      $region42: #{tpu_custom_call.1} parent=5 // pred_region
        %s473 = ssub.s32 %s13, 2
        // Predicated region
        $region44: #{tpu_custom_call.1} parent=42 // pred_check
          %p474 = pneg %p95
        $region45: #{tpu_custom_call.1} parent=42 // pred_check_branch
          %476 = sbr.rel (%p474) target = $region47
        $region46: #{tpu_custom_call.1} parent=42 // pred_region
          %s477 = sand.u32 %s80, 1
          %s478 = scalar_lea.sflag [#allocation4], %s477
          %s479 = sand.u32 %s80, 1
          %s480 = smul.addr %s479, 1024
          %s481 = scalar_lea.vmem [#allocation5], %s480
          %482 = dma.done %s478, 16384
        $region47: #{tpu_custom_call.1} parent=42 // pred_fallthru
          _
      $region43: #{tpu_custom_call.1} parent=5 // pred_fallthru
        _
    $region6: #{tpu_custom_call.1} parent=1 // loop_footer
      %s17 = sadd.s32 1, %s13
    $region7: #{tpu_custom_call.1} parent=1 // loop_footer_branch
      %12 = sbr.rel target = $region3
    $region8: #{tpu_custom_call.1} parent=1 // loop_exit
      _
    %483 = vsyncpa [#allocation3], 1
    %s484 = scalar_lea.sflag [#allocation3], 1
    %485 = vsyncpa %s484, 1
    %486 = vsyncpa [#allocation4], 1
    %s487 = scalar_lea.sflag [#allocation4], 1
    %488 = vsyncpa %s487, 1

</llo_original>
